<compile_context>
chip_gen: v7x
topology: tpu7x:2x2x1
jax: 0.10.0
libtpu: 0.0.40
codegen_flags: <defaults>
</compile_context>

<pallas_src>
import math

import numpy as np
import jax
import jax.numpy as jnp
from jax import lax
from jax.experimental import pallas as pl
from jax.experimental.pallas import tpu as pltpu

LANE = 128          # lane width (last dim)
SUB = 8             # sublane granularity
BR_MAX = 8192       # block rows: 8192*128*4B = 4 MiB per f32 input tile


def _logcosh_kernel(n_elems: int, block_rows: int, blocks_per_core: int,
                    n_blocks: int, acc_rows: int):
    """Kernel closed over static Python ints only (no captured jax arrays)."""

    def reduce_tile(v):
        # (block_rows, LANE) -> (acc_rows, LANE); vreg-aligned reshape + adds.
        return v.reshape(block_rows // acc_rows, acc_rows, LANE).sum(axis=0)

    def kernel(p_ref, t_ref, o_ref, acc_ref):
        c = pl.program_id(0)            # core-split axis ("parallel")
        b = pl.program_id(1)            # reduction axis ("arbitrary")
        blk = c * blocks_per_core + b   # logical block index

        @pl.when(b == 0)
        def _():
            acc_ref[...] = jnp.zeros_like(acc_ref)

        d = jnp.abs(p_ref[...].astype(jnp.float32) -
                    t_ref[...].astype(jnp.float32))
        # Numerically stable log(cosh(d)) + log(2); -log(2) applied in wrapper.
        val = d + jnp.log(1.0 + jnp.exp(-2.0 * d))

        # Only the last logical block (and any clamped overrun block of the
        # second core) can contain padding; everything else is known-full.
        is_edge = blk >= n_blocks - 1

        @pl.when(jnp.logical_not(is_edge))
        def _():
            acc_ref[...] += reduce_tile(val)

        @pl.when(is_edge)
        def _():
            # Mask padded / duplicated-overrun elements.  int32 global index
            # limits n_elems to < 2**31.
            row = lax.broadcasted_iota(jnp.int32, (block_rows, LANE), 0)
            lane = lax.broadcasted_iota(jnp.int32, (block_rows, LANE), 1)
            gidx = (blk * block_rows + row) * LANE + lane
            acc_ref[...] += reduce_tile(jnp.where(gidx < n_elems, val, 0.0))

        @pl.when(b == pl.num_programs(1) - 1)
        def _():
            # Small epilogue reduce to an (8, 128) lane/sublane-dense block.
            part = acc_ref[...].reshape(acc_rows // SUB, SUB, LANE).sum(axis=0)
            o_ref[...] = part.reshape(1, SUB, LANE)

    return kernel


def log_cosh_loss(y_pred: jax.Array, y_true: jax.Array) -> jax.Array:
    assert y_pred.shape == y_true.shape
    n = int(y_pred.size)

    p = y_pred.reshape(-1)
    t = y_true.reshape(-1)

    # Lane-dense slab [m, 128]; ragged tails get a minimal (<1024 elem) pad
    # that is masked out in-kernel anyway.
    chunk = SUB * LANE
    pad = (-n) % chunk
    if pad:
        p = jnp.pad(p, (0, pad))
        t = jnp.pad(t, (0, pad))
    m = (n + pad) // LANE              # rows, multiple of 8
    p = p.reshape(m, LANE)
    t = t.reshape(m, LANE)

    br = min(BR_MAX, m)                # block rows (multiple of 8)
    nblk = -(-m // br)                 # ceil-div; last block may be ragged
    ncores = 2 if nblk > 1 else 1      # always split across both TCs on v7x
    bpc = -(-nblk // ncores)           # blocks per core (ceil)
    acc_rows = 64 if br % 64 == 0 else SUB

    def in_map(c, b):
        # Clamp the possible overrun block of core 1; its logical index is
        # >= nblk, so the kernel masks its contribution to zero.
        return (jnp.minimum(c * bpc + b, nblk - 1), 0)

    out = pl.pallas_call(
        _logcosh_kernel(n, br, bpc, nblk, acc_rows),
        out_shape=jax.ShapeDtypeStruct((ncores, SUB, LANE), jnp.float32),
        grid_spec=pltpu.PrefetchScalarGridSpec(
            num_scalar_prefetch=0,
            grid=(ncores, bpc),
            in_specs=[
                pl.BlockSpec((br, LANE), in_map),
                pl.BlockSpec((br, LANE), in_map),
            ],
            out_specs=pl.BlockSpec((1, SUB, LANE), lambda c, b: (c, 0, 0)),
            scratch_shapes=[pltpu.VMEM((acc_rows, LANE), jnp.float32)],
        ),
        compiler_params=pltpu.CompilerParams(
            dimension_semantics=("parallel", "arbitrary"),
            vmem_limit_bytes=32 * 1024 * 1024,
        ),
    )(p, t)

    # Per-core / per-lane partial sums -> scalar; deferred -log(2) correction
    # for exactly the n real elements; normalize by the true count.
    return (jnp.sum(out) - n * math.log(2.0)) / n


if __name__ == "__main__":
    key = jax.random.PRNGKey(0)
    k1, k2 = jax.random.split(key)
    shape = (2, 4, 16, 16)  # small NCHW-like example
    y_pred = jax.random.normal(k1, shape, dtype=jnp.float32)
    y_true = jax.random.normal(k2, shape, dtype=jnp.float32)

    loss = log_cosh_loss(y_pred, y_true)
    jax.block_until_ready(loss)

    # Host float64 reference (same stable formula).
    d = np.abs(np.asarray(y_pred, np.float64) - np.asarray(y_true, np.float64))
    ref = np.mean(d + np.log1p(np.exp(-2.0 * d)) - math.log(2.0))
    assert np.allclose(float(loss), ref, rtol=5e-5, atol=1e-5), (float(loss), ref)

    print("KERNEL_OK")
</pallas_src>

<mosaic_0001>
module attributes {stable_mosaic.version = 11 : i64} {
  func.func @kernel(%arg0: i32, %arg1: i32, %arg2: memref<16x128xf32, #tpu.memory_space<vmem>>, %arg3: memref<16x128xf32, #tpu.memory_space<vmem>>, %arg4: memref<1x8x128xf32, #tpu.memory_space<vmem>>, %arg5: memref<8x128xf32, #tpu.memory_space<vmem>>) attributes {dimension_semantics = [#tpu.dimension_semantics<parallel>, #tpu.dimension_semantics<arbitrary>], iteration_bounds = array<i64: 1, 1>, scalar_prefetch = 0 : i64, scratch_operands = 1 : i64, tpu.core_type = #tpu.core_type<tc>, window_params = [{transform_indices = @transform_0, window_bounds = array<i64: 16, 128>}, {transform_indices = @transform_1, window_bounds = array<i64: 16, 128>}, {transform_indices = @transform_2, window_bounds = array<i64: 1, 8, 128>}]} {
    %c1_i32 = arith.constant 1 : i32
    %0 = arith.muli %arg0, %c1_i32 : i32
    %1 = arith.addi %0, %arg1 : i32
    %c0_i32 = arith.constant 0 : i32
    %2 = arith.cmpi eq, %arg1, %c0_i32 : i32
    %3 = arith.extui %2 : i1 to i32
    %c0_i32_0 = arith.constant 0 : i32
    %4 = arith.cmpi ne, %3, %c0_i32_0 : i32
    scf.if %4 {
      %cst_10 = arith.constant 0.000000e+00 : f32
      %25 = vector.broadcast %cst_10 : f32 to vector<8x128xf32>
      %c0_11 = arith.constant 0 : index
      %c0_12 = arith.constant 0 : index
      %26 = vector.load %arg5[%c0_11, %c0_12] : memref<8x128xf32, #tpu.memory_space<vmem>>, vector<8x128xf32>
      tpu.vector_store %arg5[%c0_11, %c0_12], %25 {strides = array<i32>} : memref<8x128xf32, #tpu.memory_space<vmem>>, vector<8x128xf32>,
    } else {
    }
    %c0 = arith.constant 0 : index
    %c0_1 = arith.constant 0 : index
    %5 = vector.load %arg2[%c0, %c0_1] : memref<16x128xf32, #tpu.memory_space<vmem>>, vector<16x128xf32>
    %c0_2 = arith.constant 0 : index
    %c0_3 = arith.constant 0 : index
    %6 = vector.load %arg3[%c0_2, %c0_3] : memref<16x128xf32, #tpu.memory_space<vmem>>, vector<16x128xf32>
    %7 = arith.subf %5, %6 : vector<16x128xf32>
    %8 = math.absf %7 : vector<16x128xf32>
    %cst = arith.constant -2.000000e+00 : f32
    %9 = vector.broadcast %cst : f32 to vector<16x128xf32>
    %10 = arith.mulf %9, %8 : vector<16x128xf32>
    %11 = math.exp %10 : vector<16x128xf32>
    %cst_4 = arith.constant 1.000000e+00 : f32
    %12 = vector.broadcast %cst_4 : f32 to vector<16x128xf32>
    %13 = arith.addf %12, %11 : vector<16x128xf32>
    %14 = math.log %13 : vector<16x128xf32>
    %15 = arith.addf %8, %14 : vector<16x128xf32>
    %c0_i32_5 = arith.constant 0 : i32
    %16 = arith.cmpi sge, %1, %c0_i32_5 : i32
    %true = arith.constant true
    %17 = arith.xori %16, %true : i1
    %18 = arith.extui %17 : i1 to i32
    %c0_i32_6 = arith.constant 0 : i32
    %19 = arith.cmpi ne, %18, %c0_i32_6 : i32
    scf.if %19 {
      %c0_10 = arith.constant 0 : index
      %c0_11 = arith.constant 0 : index
      %25 = vector.load %arg5[%c0_10, %c0_11] : memref<8x128xf32, #tpu.memory_space<vmem>>, vector<8x128xf32>
      %26 = vector.shape_cast %15 : vector<16x128xf32> to vector<2x8x128xf32>
      %cst_12 = arith.constant dense<0.000000e+00> : vector<8x128xf32>
      %27 = vector.multi_reduction <add>, %26, %cst_12 [0] : vector<2x8x128xf32> to vector<8x128xf32>
      %28 = arith.addf %25, %27 : vector<8x128xf32>
      %c0_13 = arith.constant 0 : index
      %c0_14 = arith.constant 0 : index
      %29 = vector.load %arg5[%c0_13, %c0_14] : memref<8x128xf32, #tpu.memory_space<vmem>>, vector<8x128xf32>
      tpu.vector_store %arg5[%c0_13, %c0_14], %28 {strides = array<i32>} : memref<8x128xf32, #tpu.memory_space<vmem>>, vector<8x128xf32>,
    } else {
    }
    %20 = arith.extui %16 : i1 to i32
    %c0_i32_7 = arith.constant 0 : i32
    %21 = arith.cmpi ne, %20, %c0_i32_7 : i32
    scf.if %21 {
      %25 = tpu.iota {dimensions = array<i32: 0>} : vector<16x128xi32>
      %26 = tpu.iota {dimensions = array<i32: 1>} : vector<16x128xi32>
      %c16_i32 = arith.constant 16 : i32
      %27 = arith.muli %1, %c16_i32 : i32
      %28 = vector.broadcast %27 : i32 to vector<16x128xi32>
      %29 = arith.addi %28, %25 : vector<16x128xi32>
      %c128_i32 = arith.constant 128 : i32
      %30 = vector.broadcast %c128_i32 : i32 to vector<16x128xi32>
      %31 = arith.muli %29, %30 : vector<16x128xi32>
      %32 = arith.addi %31, %26 : vector<16x128xi32>
      %c0_10 = arith.constant 0 : index
      %c0_11 = arith.constant 0 : index
      %33 = vector.load %arg5[%c0_10, %c0_11] : memref<8x128xf32, #tpu.memory_space<vmem>>, vector<8x128xf32>
      %c2048_i32 = arith.constant 2048 : i32
      %34 = vector.broadcast %c2048_i32 : i32 to vector<16x128xi32>
      %35 = arith.cmpi slt, %32, %34 : vector<16x128xi32>
      %cst_12 = arith.constant 0.000000e+00 : f32
      %36 = vector.broadcast %cst_12 : f32 to vector<16x128xf32>
      %37 = arith.select %35, %15, %36 : vector<16x128xi1>, vector<16x128xf32>
      %38 = vector.shape_cast %37 : vector<16x128xf32> to vector<2x8x128xf32>
      %cst_13 = arith.constant dense<0.000000e+00> : vector<8x128xf32>
      %39 = vector.multi_reduction <add>, %38, %cst_13 [0] : vector<2x8x128xf32> to vector<8x128xf32>
      %40 = arith.addf %33, %39 : vector<8x128xf32>
      %c0_14 = arith.constant 0 : index
      %c0_15 = arith.constant 0 : index
      %41 = vector.load %arg5[%c0_14, %c0_15] : memref<8x128xf32, #tpu.memory_space<vmem>>, vector<8x128xf32>
      tpu.vector_store %arg5[%c0_14, %c0_15], %40 {strides = array<i32>} : memref<8x128xf32, #tpu.memory_space<vmem>>, vector<8x128xf32>,
    } else {
    }
    %c0_i32_8 = arith.constant 0 : i32
    %22 = arith.cmpi eq, %arg1, %c0_i32_8 : i32
    %23 = arith.extui %22 : i1 to i32
    %c0_i32_9 = arith.constant 0 : i32
    %24 = arith.cmpi ne, %23, %c0_i32_9 : i32
    scf.if %24 {
      %c0_10 = arith.constant 0 : index
      %c0_11 = arith.constant 0 : index
      %25 = vector.load %arg5[%c0_10, %c0_11] : memref<8x128xf32, #tpu.memory_space<vmem>>, vector<8x128xf32>
      %26 = vector.shape_cast %25 : vector<8x128xf32> to vector<1x8x128xf32>
      %cst_12 = arith.constant dense<0.000000e+00> : vector<8x128xf32>
      %27 = vector.multi_reduction <add>, %26, %cst_12 [0] : vector<1x8x128xf32> to vector<8x128xf32>
      %28 = vector.shape_cast %27 : vector<8x128xf32> to vector<1x8x128xf32>
      %c0_13 = arith.constant 0 : index
      %c0_14 = arith.constant 0 : index
      %c0_15 = arith.constant 0 : index
      %29 = vector.load %arg4[%c0_13, %c0_14, %c0_15] : memref<1x8x128xf32, #tpu.memory_space<vmem>>, vector<1x8x128xf32>
      tpu.vector_store %arg4[%c0_13, %c0_14, %c0_15], %28 {strides = array<i32>} : memref<1x8x128xf32, #tpu.memory_space<vmem>>, vector<1x8x128xf32>,
    } else {
    }
    return
  }
  func.func @transform_0(%arg0: i32, %arg1: i32) -> (i32, i32) {
    %c1_i32 = arith.constant 1 : i32
    %0 = arith.muli %arg0, %c1_i32 : i32
    %1 = arith.addi %0, %arg1 : i32
    %c0_i32 = arith.constant 0 : i32
    %2 = arith.minsi %1, %c0_i32 : i32
    %c0_i32_0 = arith.constant 0 : i32
    %c0_i32_1 = arith.constant 0 : i32
    return %2, %c0_i32_0 : i32, i32
  }
  func.func @transform_1(%arg0: i32, %arg1: i32) -> (i32, i32) {
    %c1_i32 = arith.constant 1 : i32
    %0 = arith.muli %arg0, %c1_i32 : i32
    %1 = arith.addi %0, %arg1 : i32
    %c0_i32 = arith.constant 0 : i32
    %2 = arith.minsi %1, %c0_i32 : i32
    %c0_i32_0 = arith.constant 0 : i32
    %c0_i32_1 = arith.constant 0 : i32
    return %2, %c0_i32_0 : i32, i32
  }
  func.func @transform_2(%arg0: i32, %arg1: i32) -> (i32, i32, i32) {
    %c0_i32 = arith.constant 0 : i32
    %c0_i32_0 = arith.constant 0 : i32
    %c0_i32_1 = arith.constant 0 : i32
    return %arg0, %c0_i32, %c0_i32_0 : i32, i32, i32
  }
}

</mosaic_0001>

<llo_original>
// kernel: tpu_custom_call.1
$region0: #{tpu_custom_call.1}
  #allocation0 [shape = 'u32[]', space=smem, size = 0x4, offset = 0x4, fixed_abs, tag = 'smem constant byte address 0x4 - core index']
  #allocation1 [shape = 'u32[144,128]{1,0:T(1,128)}', space=vmem, size = 0x12000, scoped, tag = 'internal scratch']
  #allocation2 [shape = 'f32[8,128]{1,0:T(8,128)}', space=vmem, size = 0x1000, scoped, tag = 'scratch operand']
  %s0 = inlined_call_operand.hbm [shape: f32[16,128], index: 0, kind: input, shape index: {}]
  %s1 = inlined_call_operand.hbm [shape: f32[16,128], index: 1, kind: input, shape index: {}]
  %s2 = inlined_call_operand.hbm [shape: f32[1,8,128], index: 2, kind: output, shape index: {}]
  %s3 = sld [smem:[#allocation0]]
  $region42: #{tpu_custom_call.1} parent=0
    _
  %s5 = ssub.s32 1, %s3
  %s6 = scalar_select 0, %s5, %s3
  $region1: #{tpu_custom_call.1} parent=0
    #allocation3 [shape = 'u8[8192]{0}', space=vmem, size = 0x2000, scoped, tag = 'input window, operand 0, single buffered']
    #allocation4 [shape = 's32[1]{0}', space=sflag, size = 0x4, scoped, tag = 'scoped memory for tpu_custom_call.1']
    #allocation5 [shape = 's32[1]{0}', space=sflag, size = 0x4, scoped, tag = 'scoped memory for tpu_custom_call.1']
    #allocation6 [shape = 'u8[8192]{0}', space=vmem, size = 0x2000, scoped, tag = 'input window, operand 1, single buffered']
    #allocation7 [shape = 's32[1]{0}', space=sflag, size = 0x4, scoped, tag = 'scoped memory for tpu_custom_call.1']
    #allocation8 [shape = 'u8[4096]{0}', space=vmem, size = 0x1000, scoped, tag = 'output window, operand 0, single buffered']
    %7 = vsyncpa [#allocation4], 0
    %8 = vsyncpa [#allocation7], 0
    %9 = vsyncpa [#allocation5], 0
    // Predicated region
    $region2: #{tpu_custom_call.1} parent=1 // pred_check
      _
    $region3: #{tpu_custom_call.1} parent=1 // pred_check_branch
      %11 = sbr.rel (0) target = $region5
    $region4: #{tpu_custom_call.1} parent=1 // pred_region
      %s12 = sadd.s32 0, 0
      %p13 = scmp.lt.s32.totalorder %s12, 0
      %s14 = scalar_select %p13, %s12, 0
      %s15 = smul.u32 2, %s14
      %s17 = ssub.s32 256, 256
      %18 = vsyncadd [#allocation4], %s17
      %s19 = smul.addr %s15, 128
      %s20 = scalar_lea.hbm %s0, %s19
      %s21 = sshll.u32 [#allocation3], 4
      %s22 = int_to_ptr.vmem [resolvable:$true] %s21
      %27 = dma.hbm_to_vmem [thread:$0]  %s20, 256, %s22, [#allocation4], 128, 128, 8
    $region5: #{tpu_custom_call.1} parent=1 // pred_fallthru
      _
    // Predicated region
    $region6: #{tpu_custom_call.1} parent=1 // pred_check
      _
    $region7: #{tpu_custom_call.1} parent=1 // pred_check_branch
      %29 = sbr.rel (0) target = $region9
    $region8: #{tpu_custom_call.1} parent=1 // pred_region
      %s30 = sadd.s32 0, 0
      %p31 = scmp.lt.s32.totalorder %s30, 0
      %s32 = scalar_select %p31, %s30, 0
      %s33 = smul.u32 2, %s32
      %s35 = ssub.s32 256, 256
      %36 = vsyncadd [#allocation7], %s35
      %s37 = smul.addr %s33, 128
      %s38 = scalar_lea.hbm %s1, %s37
      %s39 = sshll.u32 [#allocation6], 4
      %s40 = int_to_ptr.vmem [resolvable:$true] %s39
      %45 = dma.hbm_to_vmem [thread:$0]  %s38, 256, %s40, [#allocation7], 128, 128, 8
    $region9: #{tpu_custom_call.1} parent=1 // pred_fallthru
      _
    // Predicated region
    $region10: #{tpu_custom_call.1} parent=1 // pred_check
      _
    $region11: #{tpu_custom_call.1} parent=1 // pred_check_branch
      %47 = sbr.rel (0) target = $region13
    $region12: #{tpu_custom_call.1} parent=1 // pred_region
      %48 = dma.done [#allocation4], 256
    $region13: #{tpu_custom_call.1} parent=1 // pred_fallthru
      _
    // Predicated region
    $region14: #{tpu_custom_call.1} parent=1 // pred_check
      _
    $region15: #{tpu_custom_call.1} parent=1 // pred_check_branch
      %50 = sbr.rel (0) target = $region17
    $region16: #{tpu_custom_call.1} parent=1 // pred_region
      %51 = dma.done [#allocation7], 256
    $region17: #{tpu_custom_call.1} parent=1 // pred_fallthru
      _
    %s52 = sadd.s32 0, 0
    %p53 = scmp.lt.s32.totalorder %s52, 0
    %s54 = scalar_select %p53, %s52, 0
    %s55 = smul.u32 2, %s54
    %s56 = sadd.s32 0, 0
    %p57 = scmp.lt.s32.totalorder %s56, 0
    %s58 = scalar_select %p57, %s56, 0
    %s59 = smul.u32 2, %s58
    %s60 = sadd.s32 0, 0
    %p61 = scmp.eq.s32.totalorder 0, 0
    // Predicated region
    $region18: #{tpu_custom_call.1} parent=1 // pred_check
      %p62 = pneg %p61
    $region19: #{tpu_custom_call.1} parent=1 // pred_check_branch
      %64 = sbr.rel (%p62) target = $region21
    $region20: #{tpu_custom_call.1} parent=1 // pred_region
      %65 = vst [vmem:[#allocation2] sm:$0xff] 0.0
    $region21: #{tpu_custom_call.1} parent=1 // pred_fallthru
      _
    %v66 = vld [vmem:[#allocation3] sm:$0xff]
    %v67 = vld [vmem:[#allocation3 + $0x8] sm:$0xff]
    %v68 = vld [vmem:[#allocation6] sm:$0xff]
    %v69 = vld [vmem:[#allocation6 + $0x8] sm:$0xff]
    %v70 = vsub.f32 %v66, %v68
    %v71 = vsub.f32 %v67, %v69
    %v72 = vand.u32 2147483647, %v70
    %v73 = vand.u32 2147483647, %v71
    %v74 = vmul.f32 %v72, -2.0
    %v75 = vmul.f32 %v73, -2.0
    %v76 = vmul.f32 %v74, 1.442695
    %v77 = vpow.pop %v76
    %v78 = vmul.f32 %v75, 1.442695
    %v79 = vpow.pop %v78
    %v80 = vadd.f32 %v77, 1.0
    %v81 = vadd.f32 %v79, 1.0
    %v82 = vlog2.pop %v80
    %v83 = vmul.f32 %v82, 0.6931472
    %v84 = vlog2.pop %v81
    %v85 = vmul.f32 %v84, 0.6931472
    %v86 = vadd.f32 %v72, %v83
    %v87 = vadd.f32 %v73, %v85
    %p88 = scmp.ge.s32.totalorder %s60, 0
    %p89 = scmp.lt.s32.totalorder %s60, 0
    // Predicated region
    $region22: #{tpu_custom_call.1} parent=1 // pred_check
      %p90 = pneg %p89
    $region23: #{tpu_custom_call.1} parent=1 // pred_check_branch
      %92 = sbr.rel (%p90) target = $region25
    $region24: #{tpu_custom_call.1} parent=1 // pred_region
      %v93 = vld [vmem:[#allocation2] sm:$0xff]
      %v94 = vadd.f32 %v86, %v87
      %v95 = vadd.f32 %v93, %v94
      %96 = vst [vmem:[#allocation2] sm:$0xff] %v95
    $region25: #{tpu_custom_call.1} parent=1 // pred_fallthru
      _
    // Predicated region
    $region26: #{tpu_custom_call.1} parent=1 // pred_check
      %p97 = pneg %p88
    $region27: #{tpu_custom_call.1} parent=1 // pred_check_branch
      %99 = sbr.rel (%p97) target = $region29
    $region28: #{tpu_custom_call.1} parent=1 // pred_region
      %v100 = vlaneseq
      %v101 = vshrl.u32 %v100, 7
      %v102 = vadd.s32 %v101, 8
      %v103 = vlaneseq
      %v104 = vand.u32 %v103, 127
      %s105 = smul.u32 %s60, 16
      %v106 = vstv %s105
      %v107 = vadd.s32 %v106, %v101
      %v108 = vadd.s32 %v106, %v102
      %v109 = vmul.u32 %v107, 128
      %v110 = vmul.u32 %v108, 128
      %v111 = vadd.s32 %v109, %v104
      %v112 = vadd.s32 %v110, %v104
      %v113 = vld [vmem:[#allocation2] sm:$0xff]
      %vm114 = vcmp.lt.s32.totalorder %v111, 2048
      %vm115 = vcmp.lt.s32.totalorder %v112, 2048
      %v116 = vsel %vm114, %v86, 0.0
      %v117 = vsel %vm115, %v87, 0.0
      %v118 = vadd.f32 %v116, %v117
      %v119 = vadd.f32 %v113, %v118
      %120 = vst [vmem:[#allocation2] sm:$0xff] %v119
    $region29: #{tpu_custom_call.1} parent=1 // pred_fallthru
      _
    // Predicated region
    $region30: #{tpu_custom_call.1} parent=1 // pred_check
      %p121 = pneg %p61
    $region31: #{tpu_custom_call.1} parent=1 // pred_check_branch
      %123 = sbr.rel (%p121) target = $region33
    $region32: #{tpu_custom_call.1} parent=1 // pred_region
      %v124 = vld [vmem:[#allocation2] sm:$0xff]
      %v125 = vadd.f32 %v124, 0.0
      %126 = vst [vmem:[#allocation8] sm:$0xff] %v125
    $region33: #{tpu_custom_call.1} parent=1 // pred_fallthru
      _
    // Predicated region
    $region34: #{tpu_custom_call.1} parent=1 // pred_check
      _
    $region35: #{tpu_custom_call.1} parent=1 // pred_check_branch
      %128 = sbr.rel (0) target = $region37
    $region36: #{tpu_custom_call.1} parent=1 // pred_region
      %s130 = ssub.s32 128, 128
      %131 = vsyncadd [#allocation5], %s130
      %s133 = sshll.u32 [#allocation8], 4
      %s134 = int_to_ptr.vmem [resolvable:$true] %s133
      %136 = dma.vmem_to_hbm [thread:$0]  %s134, 128, %s2, [#allocation5]
    $region37: #{tpu_custom_call.1} parent=1 // pred_fallthru
      _
    // Predicated region
    $region38: #{tpu_custom_call.1} parent=1 // pred_check
      _
    $region39: #{tpu_custom_call.1} parent=1 // pred_check_branch
      %138 = sbr.rel (0) target = $region41
    $region40: #{tpu_custom_call.1} parent=1 // pred_region
      %139 = dma.done [#allocation5], 128
    $region41: #{tpu_custom_call.1} parent=1 // pred_fallthru
      _
    %140 = vsyncpa [#allocation4], 1
    %141 = vsyncpa [#allocation7], 1
    %142 = vsyncpa [#allocation5], 1

</llo_original>
